<compile_context>
chip_gen: v7x
topology: tpu7x:2x2x1
jax: 0.10.0
libtpu: 0.0.40
codegen_flags: <defaults>
</compile_context>

<pallas_src>
import functools

import jax
import jax.numpy as jnp
from jax.experimental import pallas as pl
from jax.experimental.pallas import tpu as pltpu


def _leaky_relu(v, slope=0.2):
    return jnp.where(v >= 0, v, slope * v)


# ----------------------------------------------------------------------------
# Shared attention math (operates on per-lane sum / max statistics).
# ----------------------------------------------------------------------------
def _attention_lanes(s, m, w1, b1, w2a, w2m, bmix, *, groups, feat, inv_n):
    """Attention weights, lane-broadcast layout.

    s, m: (Bt, L) f32 per-lane sum / max where L = groups * feat.  When
    groups > 1 (lane-packed layout, L == 128) the per-channel statistic is
    split across `groups` lane groups; fold them with vreg-aligned XLU rotates
    so every lane carries its channel's full statistic (already broadcast for
    the write-back multiply).  The Conv1d mix is pre-folded into w2a/w2m/bmix.
    """
    s_all, m_all = s, m
    for g in range(1, groups):
        s_all = s_all + pltpu.roll(s, g * feat, 1)
        m_all = jnp.maximum(m_all, pltpu.roll(m, g * feat, 1))
    avg = s_all * inv_n
    h_a = _leaky_relu(jnp.dot(avg, w1, preferred_element_type=jnp.float32) + b1)
    h_m = _leaky_relu(jnp.dot(m_all, w1, preferred_element_type=jnp.float32) + b1)
    mixed = (jnp.dot(h_a, w2a, preferred_element_type=jnp.float32)
             + jnp.dot(h_m, w2m, preferred_element_type=jnp.float32)
             + bmix)
    return jax.nn.sigmoid(_leaky_relu(mixed))


# ----------------------------------------------------------------------------
# Single-pass kernel: whole (N, F) slab per batch tile resident in VMEM.
# ----------------------------------------------------------------------------
def _eca_kernel(x_ref, w1_ref, b1_ref, w2a_ref, w2m_ref, bmix_ref, o_ref,
                *, groups, feat, inv_n):
    # Re-read x_ref per use (sum / max / write-back) rather than holding one
    # kernel-long tile-sized live value; accumulate the sum in f32.
    s = jnp.sum(x_ref[...].astype(jnp.float32), axis=1)       # (Bt, L)
    m = jnp.max(x_ref[...], axis=1).astype(jnp.float32)       # (Bt, L)
    att = _attention_lanes(s, m, w1_ref[...], b1_ref[...], w2a_ref[...],
                           w2m_ref[...], bmix_ref[...],
                           groups=groups, feat=feat, inv_n=inv_n)
    o_ref[...] = (x_ref[...] * att[:, None, :]).astype(o_ref.dtype)


# ----------------------------------------------------------------------------
# Two-pass fallback kernels (large N*F): chunked stats, then streaming apply.
# ----------------------------------------------------------------------------
def _stats_kernel(x_ref, sum_ref, max_ref, *, rows_total, rows_per_block):
    ni = pl.program_id(0)
    xf = x_ref[...].astype(jnp.float32)                        # (B, nt, L)
    ridx = jax.lax.broadcasted_iota(jnp.int32, xf.shape, 1) + ni * rows_per_block
    valid = ridx < rows_total                                  # mask ragged tail
    s = jnp.sum(jnp.where(valid, xf, 0.0), axis=1)
    m = jnp.max(jnp.where(valid, xf, -jnp.inf), axis=1)

    @pl.when(ni == 0)
    def _():
        sum_ref[...] = s
        max_ref[...] = m

    @pl.when(ni > 0)
    def _():
        sum_ref[...] += s
        max_ref[...] = jnp.maximum(max_ref[...], m)


def _apply_kernel(x_ref, sum_ref, max_ref, w1_ref, b1_ref, w2a_ref, w2m_ref,
                  bmix_ref, o_ref, *, groups, feat, inv_n):
    # att recompute is O(B*F*red) per step — noise next to the HBM streaming.
    att = _attention_lanes(sum_ref[...], max_ref[...], w1_ref[...], b1_ref[...],
                           w2a_ref[...], w2m_ref[...], bmix_ref[...],
                           groups=groups, feat=feat, inv_n=inv_n)
    o_ref[...] = (x_ref[...] * att[:, None, :]).astype(o_ref.dtype)


# ----------------------------------------------------------------------------
# Wrapper helpers.
# ----------------------------------------------------------------------------
def _prepare_weights(w1, b1, w2, b2, cw, cb, groups):
    """Fold the Conv1d(2->1, k=3, pad=1) into the second Linear, then (for the
    lane-packed layout) replicate weights along the 128-lane axis."""
    f32 = jnp.float32
    w1, b1, w2, b2 = (a.astype(f32) for a in (w1, b1, w2, b2))
    cw, cb = cw.astype(f32), cb.astype(f32)
    feat = w2.shape[1]

    def conv_fold(v, taps):
        # sum_j taps[j] * shift_{j-1}(v) along the channel axis, zero padded.
        vp = jnp.pad(v, [(0, 0)] * (v.ndim - 1) + [(1, 1)])
        return (taps[0] * vp[..., 0:feat]
                + taps[1] * vp[..., 1:feat + 1]
                + taps[2] * vp[..., 2:feat + 2])

    w2a = conv_fold(w2, cw[0])                                   # (red, F)
    w2m = conv_fold(w2, cw[1])                                   # (red, F)
    bmix = conv_fold(b2, cw[0]) + conv_fold(b2, cw[1]) + cb[0]   # (1, F)

    if groups > 1:
        w1 = jnp.tile(w1, (groups, 1)) / groups                  # (128, red)
        w2a = jnp.tile(w2a, (1, groups))                         # (red, 128)
        w2m = jnp.tile(w2m, (1, groups))
        bmix = jnp.tile(bmix, (1, groups))                       # (1, 128)
    return w1, b1, w2a, w2m, bmix


def _vmem_budgets():
    """(vmem_limit_bytes, per-step tile budget) for the local TPU generation."""
    cap = 64 * 1024 * 1024
    try:
        cap = int(getattr(pltpu.get_tpu_info(), "vmem_capacity_bytes", cap))
    except Exception:
        pass
    if cap >= 100 * 1024 * 1024:                  # v5e / v6e: 128 MiB physical
        return 96 * 1024 * 1024, 48 * 1024 * 1024
    return 48 * 1024 * 1024, 16 * 1024 * 1024     # v7x: 64 MiB physical


def _is_multi_core_tc():
    try:
        return "v7" in jax.devices()[0].device_kind.lower()
    except Exception:
        return False


def _single_pass(xp, weights, *, bt, groups, feat, n_seq, vmem_limit, sem_options):
    w1, b1, w2a, w2m, bmix = weights
    B, rows, lanes = xp.shape
    red = w1.shape[1]
    steps = pl.cdiv(B, bt)
    kernel = functools.partial(_eca_kernel, groups=groups, feat=feat,
                               inv_n=1.0 / n_seq)

    def build(sem):
        return pl.pallas_call(
            kernel,
            out_shape=jax.ShapeDtypeStruct(xp.shape, xp.dtype),
            grid=(steps,),
            in_specs=[
                pl.BlockSpec((bt, rows, lanes), lambda b: (b, 0, 0)),
                pl.BlockSpec((lanes, red), lambda b: (0, 0)),
                pl.BlockSpec((1, red), lambda b: (0, 0)),
                pl.BlockSpec((red, lanes), lambda b: (0, 0)),
                pl.BlockSpec((red, lanes), lambda b: (0, 0)),
                pl.BlockSpec((1, lanes), lambda b: (0, 0)),
            ],
            out_specs=pl.BlockSpec((bt, rows, lanes), lambda b: (b, 0, 0)),
            compiler_params=pltpu.CompilerParams(
                dimension_semantics=sem, vmem_limit_bytes=vmem_limit),
        )(xp, w1, b1, w2a, w2m, bmix)

    err = None
    for sem in sem_options:                 # CORE_PARALLEL probe -> "parallel"
        try:
            return build(sem)
        except Exception as e:              # pragma: no cover
            err = e
    raise err


def _two_pass(xp, weights, *, groups, feat, n_seq, tile_budget, vmem_limit):
    w1, b1, w2a, w2m, bmix = weights
    B, rows, lanes = xp.shape
    red = w1.shape[1]
    itemsize = xp.dtype.itemsize

    row_bytes = B * lanes * itemsize
    nt = max(8, ((tile_budget // (4 * row_bytes)) // 8) * 8)
    nt = min(nt, rows)                      # full `rows`, or a multiple of 8
    steps = pl.cdiv(rows, nt)

    # Pass 1: per-lane sum / max accumulated across row chunks.
    sums, maxes = pl.pallas_call(
        functools.partial(_stats_kernel, rows_total=rows, rows_per_block=nt),
        out_shape=(jax.ShapeDtypeStruct((B, lanes), jnp.float32),
                   jax.ShapeDtypeStruct((B, lanes), jnp.float32)),
        grid=(steps,),
        in_specs=[pl.BlockSpec((B, nt, lanes), lambda n: (0, n, 0))],
        out_specs=(pl.BlockSpec((B, lanes), lambda n: (0, 0)),
                   pl.BlockSpec((B, lanes), lambda n: (0, 0))),
        compiler_params=pltpu.CompilerParams(
            dimension_semantics=("arbitrary",), vmem_limit_bytes=vmem_limit),
    )(xp)

    # Pass 2: stream x through again and apply the attention.
    return pl.pallas_call(
        functools.partial(_apply_kernel, groups=groups, feat=feat,
                          inv_n=1.0 / n_seq),
        out_shape=jax.ShapeDtypeStruct(xp.shape, xp.dtype),
        grid=(steps,),
        in_specs=[
            pl.BlockSpec((B, nt, lanes), lambda n: (0, n, 0)),
            pl.BlockSpec((B, lanes), lambda n: (0, 0)),
            pl.BlockSpec((B, lanes), lambda n: (0, 0)),
            pl.BlockSpec((lanes, red), lambda n: (0, 0)),
            pl.BlockSpec((1, red), lambda n: (0, 0)),
            pl.BlockSpec((red, lanes), lambda n: (0, 0)),
            pl.BlockSpec((red, lanes), lambda n: (0, 0)),
            pl.BlockSpec((1, lanes), lambda n: (0, 0)),
        ],
        out_specs=pl.BlockSpec((B, nt, lanes), lambda n: (0, n, 0)),
        compiler_params=pltpu.CompilerParams(
            dimension_semantics=("parallel",), vmem_limit_bytes=vmem_limit),
    )(xp, sums, maxes, w1, b1, w2a, w2m, bmix)


def enhanced_channel_attention(x, w1, b1, w2, b2, cw, cb, *, tile_vmem_budget=None):
    """Forward pass of EnhancedChannelAttention: (B, N, F) -> (B, N, F)."""
    B, N, Fd = x.shape
    itemsize = x.dtype.itemsize
    vmem_limit, default_budget = _vmem_budgets()
    tile_budget = default_budget if tile_vmem_budget is None else int(tile_vmem_budget)

    # Lane-dense packing: (B, N, F) -> (B, N*F/128, 128) (pure metadata
    # reshape) so stores are full-lane vst even when F < 128.
    if Fd < 128 and 128 % Fd == 0 and (N * Fd) % 128 == 0:
        groups = 128 // Fd
    else:
        groups = 1
    lanes = Fd * groups
    rows = (N * Fd) // lanes                 # == N when groups == 1
    xp = x.reshape(B, rows, lanes)

    weights = _prepare_weights(w1, b1, w2, b2, cw, cb, groups)

    bytes_per_batch = rows * lanes * itemsize
    if 4 * bytes_per_batch > tile_budget:
        # One (N, F) slab does not fit the per-step budget: two-pass fallback.
        out = _two_pass(xp, weights, groups=groups, feat=Fd, n_seq=N,
                        tile_budget=tile_budget, vmem_limit=vmem_limit)
    else:
        bt = max(1, tile_budget // (4 * bytes_per_batch))
        bt = min(bt, B)
        multi_tc = _is_multi_core_tc()
        if multi_tc and B > 1:
            bt = min(bt, pl.cdiv(B, 2))      # >= 2 grid steps so both v7x TCs work
        steps = pl.cdiv(B, bt)               # partial tail block, no divisor search
        sem_options = [("parallel",)]
        core_parallel = getattr(pltpu, "CORE_PARALLEL", None)
        if multi_tc and steps >= 2 and core_parallel is not None:
            sem_options.insert(0, (core_parallel,))
        out = _single_pass(xp, weights, bt=bt, groups=groups, feat=Fd, n_seq=N,
                           vmem_limit=vmem_limit, sem_options=sem_options)
    return out.reshape(B, N, Fd)


# ----------------------------------------------------------------------------
# Pure-JAX reference mirroring the PyTorch forward (pad-based conv).
# ----------------------------------------------------------------------------
def reference(x, w1, b1, w2, b2, cw, cb):
    B, N, Fd = x.shape
    xt = jnp.transpose(x, (0, 2, 1))               # (B, F, N)
    avg = jnp.mean(xt, axis=-1)                    # (B, F)
    mx = jnp.max(xt, axis=-1)                      # (B, F)

    def mlp(v):
        h = _leaky_relu(v @ w1 + b1)
        return h @ w2 + b2

    a, m = mlp(avg), mlp(mx)
    stacked = jnp.stack([a, m], axis=1)            # (B, 2, F)
    padded = jnp.pad(stacked, ((0, 0), (0, 0), (1, 1)))
    conv = (padded[:, :, 0:Fd] * cw[:, 0][None, :, None]
            + padded[:, :, 1:Fd + 1] * cw[:, 1][None, :, None]
            + padded[:, :, 2:Fd + 2] * cw[:, 2][None, :, None]).sum(axis=1) + cb[0]
    att = jax.nn.sigmoid(_leaky_relu(conv))        # (B, F)
    return jnp.transpose(xt * att[:, :, None], (0, 2, 1))


if __name__ == "__main__":
    def make_inputs(key, B, N, Fd, ratio=4):
        red = max(1, Fd // ratio)
        ks = jax.random.split(key, 7)
        x = jax.random.normal(ks[0], (B, N, Fd), dtype=jnp.float32)
        w1 = jax.random.normal(ks[1], (Fd, red), dtype=jnp.float32) * 0.2
        b1 = jax.random.normal(ks[2], (1, red), dtype=jnp.float32) * 0.1
        w2 = jax.random.normal(ks[3], (red, Fd), dtype=jnp.float32) * 0.2
        b2 = jax.random.normal(ks[4], (1, Fd), dtype=jnp.float32) * 0.1
        cw = jax.random.normal(ks[5], (2, 3), dtype=jnp.float32) * 0.3
        cb = jax.random.normal(ks[6], (1,), dtype=jnp.float32) * 0.1
        return x, w1, b1, w2, b2, cw, cb

    key = jax.random.PRNGKey(0)
    tol = dict(atol=5e-5, rtol=5e-5)

    # Primary case (module-sized small shapes): lane-packed single-pass path.
    args = make_inputs(key, B=2, N=16, Fd=32)
    out = jax.block_until_ready(enhanced_channel_attention(*args))
    assert out.shape == (2, 16, 32)
    assert jnp.allclose(out, reference(*args), **tol), "mismatch (primary)"

    # Partial tail batch block (grid = cdiv(B, bt), no divisor search).
    args = make_inputs(jax.random.fold_in(key, 1), B=3, N=16, Fd=32)
    out = jax.block_until_ready(
        enhanced_channel_attention(*args, tile_vmem_budget=16 * 1024))
    assert jnp.allclose(out, reference(*args), **tol), "mismatch (partial batch)"

    # Two-pass fallback: chunked stats with masked ragged tail + apply pass.
    args = make_inputs(jax.random.fold_in(key, 2), B=3, N=80, Fd=32)
    out = jax.block_until_ready(
        enhanced_channel_attention(*args, tile_vmem_budget=16 * 1024))
    assert jnp.allclose(out, reference(*args), **tol), "mismatch (two-pass)"

    # Unpacked path (F already a full lane width).
    args = make_inputs(jax.random.fold_in(key, 3), B=2, N=8, Fd=128)
    out = jax.block_until_ready(enhanced_channel_attention(*args))
    assert jnp.allclose(out, reference(*args), **tol), "mismatch (F=128)"

    print("KERNEL_OK")
</pallas_src>

<mosaic_0001>
module attributes {stable_mosaic.version = 11 : i64} {
  func.func @_eca_kernel(%arg0: i32, %arg1: memref<2x4x128xf32, #tpu.memory_space<vmem>>, %arg2: memref<128x8xf32, #tpu.memory_space<vmem>>, %arg3: memref<1x8xf32, #tpu.memory_space<vmem>>, %arg4: memref<8x128xf32, #tpu.memory_space<vmem>>, %arg5: memref<8x128xf32, #tpu.memory_space<vmem>>, %arg6: memref<1x128xf32, #tpu.memory_space<vmem>>, %arg7: memref<2x4x128xf32, #tpu.memory_space<vmem>>) attributes {dimension_semantics = [#tpu.dimension_semantics<parallel>], iteration_bounds = array<i64: 1>, scalar_prefetch = 0 : i64, scratch_operands = 0 : i64, tpu.core_type = #tpu.core_type<tc>, window_params = [{transform_indices = @transform_0, window_bounds = array<i64: 2, 4, 128>}, {pipeline_mode = #tpu.pipeline_mode<synchronous>, transform_indices = @transform_1, window_bounds = array<i64: 128, 8>}, {pipeline_mode = #tpu.pipeline_mode<synchronous>, transform_indices = @transform_2, window_bounds = array<i64: 1, 8>}, {pipeline_mode = #tpu.pipeline_mode<synchronous>, transform_indices = @transform_3, window_bounds = array<i64: 8, 128>}, {pipeline_mode = #tpu.pipeline_mode<synchronous>, transform_indices = @transform_4, window_bounds = array<i64: 8, 128>}, {pipeline_mode = #tpu.pipeline_mode<synchronous>, transform_indices = @transform_5, window_bounds = array<i64: 1, 128>}, {transform_indices = @transform_6, window_bounds = array<i64: 2, 4, 128>}]} {
    %c0 = arith.constant 0 : index
    %c0_0 = arith.constant 0 : index
    %c0_1 = arith.constant 0 : index
    %0 = vector.load %arg1[%c0, %c0_0, %c0_1] : memref<2x4x128xf32, #tpu.memory_space<vmem>>, vector<2x4x128xf32>
    %cst = arith.constant dense<0.000000e+00> : vector<2x128xf32>
    %1 = vector.multi_reduction <add>, %0, %cst [1] : vector<2x4x128xf32> to vector<2x128xf32>
    %c0_2 = arith.constant 0 : index
    %c0_3 = arith.constant 0 : index
    %c0_4 = arith.constant 0 : index
    %2 = vector.load %arg1[%c0_2, %c0_3, %c0_4] : memref<2x4x128xf32, #tpu.memory_space<vmem>>, vector<2x4x128xf32>
    %cst_5 = arith.constant dense<0xFF800000> : vector<2x128xf32>
    %3 = vector.multi_reduction <maximumf>, %2, %cst_5 [1] : vector<2x4x128xf32> to vector<2x128xf32>
    %c0_6 = arith.constant 0 : index
    %c0_7 = arith.constant 0 : index
    %4 = vector.load %arg2[%c0_6, %c0_7] : memref<128x8xf32, #tpu.memory_space<vmem>>, vector<128x8xf32>
    %c0_8 = arith.constant 0 : index
    %c0_9 = arith.constant 0 : index
    %5 = vector.load %arg3[%c0_8, %c0_9] : memref<1x8xf32, #tpu.memory_space<vmem>>, vector<1x8xf32>
    %c0_10 = arith.constant 0 : index
    %c0_11 = arith.constant 0 : index
    %6 = vector.load %arg4[%c0_10, %c0_11] : memref<8x128xf32, #tpu.memory_space<vmem>>, vector<8x128xf32>
    %c0_12 = arith.constant 0 : index
    %c0_13 = arith.constant 0 : index
    %7 = vector.load %arg5[%c0_12, %c0_13] : memref<8x128xf32, #tpu.memory_space<vmem>>, vector<8x128xf32>
    %c0_14 = arith.constant 0 : index
    %c0_15 = arith.constant 0 : index
    %8 = vector.load %arg6[%c0_14, %c0_15] : memref<1x128xf32, #tpu.memory_space<vmem>>, vector<1x128xf32>
    %c32_i32 = arith.constant 32 : i32
    %9 = tpu.dynamic_rotate %1 by %c32_i32 dim 1 : vector<2x128xf32>, i32 -> vector<2x128xf32>
    %10 = arith.addf %1, %9 : vector<2x128xf32>
    %c32_i32_16 = arith.constant 32 : i32
    %11 = tpu.dynamic_rotate %3 by %c32_i32_16 dim 1 : vector<2x128xf32>, i32 -> vector<2x128xf32>
    %12 = arith.maximumf %3, %11 : vector<2x128xf32>
    %c64_i32 = arith.constant 64 : i32
    %13 = tpu.dynamic_rotate %1 by %c64_i32 dim 1 : vector<2x128xf32>, i32 -> vector<2x128xf32>
    %14 = arith.addf %10, %13 : vector<2x128xf32>
    %c64_i32_17 = arith.constant 64 : i32
    %15 = tpu.dynamic_rotate %3 by %c64_i32_17 dim 1 : vector<2x128xf32>, i32 -> vector<2x128xf32>
    %16 = arith.maximumf %12, %15 : vector<2x128xf32>
    %c96_i32 = arith.constant 96 : i32
    %17 = tpu.dynamic_rotate %1 by %c96_i32 dim 1 : vector<2x128xf32>, i32 -> vector<2x128xf32>
    %18 = arith.addf %14, %17 : vector<2x128xf32>
    %c96_i32_18 = arith.constant 96 : i32
    %19 = tpu.dynamic_rotate %3 by %c96_i32_18 dim 1 : vector<2x128xf32>, i32 -> vector<2x128xf32>
    %20 = arith.maximumf %16, %19 : vector<2x128xf32>
    %cst_19 = arith.constant 6.250000e-02 : f32
    %21 = vector.broadcast %cst_19 : f32 to vector<2x128xf32>
    %22 = arith.mulf %18, %21 : vector<2x128xf32>
    %cst_20 = arith.constant dense<0.000000e+00> : vector<2x8xf32>
    %23 = tpu.matmul %22, %4, %cst_20 {dimension_numbers = #tpu.dot_dimension_numbers<[1], [0], [0], [1], [0, 0, 1, 1], [], []>} : vector<2x128xf32>, vector<128x8xf32>, vector<2x8xf32> -> vector<2x8xf32>
    %24 = vector.broadcast %5 : vector<1x8xf32> to vector<2x8xf32>
    %25 = arith.addf %23, %24 : vector<2x8xf32>
    %cst_21 = arith.constant 0.000000e+00 : f32
    %26 = vector.broadcast %cst_21 : f32 to vector<2x8xf32>
    %27 = arith.cmpf oge, %25, %26 : vector<2x8xf32>
    %cst_22 = arith.constant 2.000000e-01 : f32
    %28 = vector.broadcast %cst_22 : f32 to vector<2x8xf32>
    %29 = arith.mulf %28, %25 : vector<2x8xf32>
    %30 = arith.select %27, %25, %29 : vector<2x8xi1>, vector<2x8xf32>
    %cst_23 = arith.constant dense<0.000000e+00> : vector<2x8xf32>
    %31 = tpu.matmul %20, %4, %cst_23 {dimension_numbers = #tpu.dot_dimension_numbers<[1], [0], [0], [1], [0, 0, 1, 1], [], []>} : vector<2x128xf32>, vector<128x8xf32>, vector<2x8xf32> -> vector<2x8xf32>
    %32 = vector.broadcast %5 : vector<1x8xf32> to vector<2x8xf32>
    %33 = arith.addf %31, %32 : vector<2x8xf32>
    %cst_24 = arith.constant 0.000000e+00 : f32
    %34 = vector.broadcast %cst_24 : f32 to vector<2x8xf32>
    %35 = arith.cmpf oge, %33, %34 : vector<2x8xf32>
    %cst_25 = arith.constant 2.000000e-01 : f32
    %36 = vector.broadcast %cst_25 : f32 to vector<2x8xf32>
    %37 = arith.mulf %36, %33 : vector<2x8xf32>
    %38 = arith.select %35, %33, %37 : vector<2x8xi1>, vector<2x8xf32>
    %cst_26 = arith.constant dense<0.000000e+00> : vector<2x128xf32>
    %39 = tpu.matmul %30, %6, %cst_26 {dimension_numbers = #tpu.dot_dimension_numbers<[1], [0], [0], [1], [0, 0, 1, 1], [], []>} : vector<2x8xf32>, vector<8x128xf32>, vector<2x128xf32> -> vector<2x128xf32>
    %cst_27 = arith.constant dense<0.000000e+00> : vector<2x128xf32>
    %40 = tpu.matmul %38, %7, %cst_27 {dimension_numbers = #tpu.dot_dimension_numbers<[1], [0], [0], [1], [0, 0, 1, 1], [], []>} : vector<2x8xf32>, vector<8x128xf32>, vector<2x128xf32> -> vector<2x128xf32>
    %41 = arith.addf %39, %40 : vector<2x128xf32>
    %42 = vector.broadcast %8 : vector<1x128xf32> to vector<2x128xf32>
    %43 = arith.addf %41, %42 : vector<2x128xf32>
    %cst_28 = arith.constant 0.000000e+00 : f32
    %44 = vector.broadcast %cst_28 : f32 to vector<2x128xf32>
    %45 = arith.cmpf oge, %43, %44 : vector<2x128xf32>
    %cst_29 = arith.constant 2.000000e-01 : f32
    %46 = vector.broadcast %cst_29 : f32 to vector<2x128xf32>
    %47 = arith.mulf %46, %43 : vector<2x128xf32>
    %48 = arith.select %45, %43, %47 : vector<2x128xi1>, vector<2x128xf32>
    %49 = arith.negf %48 : vector<2x128xf32>
    %50 = math.exp %49 : vector<2x128xf32>
    %cst_30 = arith.constant 1.000000e+00 : f32
    %51 = vector.broadcast %cst_30 : f32 to vector<2x128xf32>
    %52 = arith.addf %51, %50 : vector<2x128xf32>
    %53 = arith.divf %51, %52 : vector<2x128xf32>
    %c0_31 = arith.constant 0 : index
    %c0_32 = arith.constant 0 : index
    %c0_33 = arith.constant 0 : index
    %54 = vector.load %arg1[%c0_31, %c0_32, %c0_33] : memref<2x4x128xf32, #tpu.memory_space<vmem>>, vector<2x4x128xf32>
    %55 = vector.shape_cast %53 : vector<2x128xf32> to vector<2x1x128xf32>
    %56 = vector.broadcast %55 : vector<2x1x128xf32> to vector<2x4x128xf32>
    %57 = arith.mulf %54, %56 : vector<2x4x128xf32>
    %c0_34 = arith.constant 0 : index
    %c0_35 = arith.constant 0 : index
    %c0_36 = arith.constant 0 : index
    %58 = vector.load %arg7[%c0_34, %c0_35, %c0_36] : memref<2x4x128xf32, #tpu.memory_space<vmem>>, vector<2x4x128xf32>
    tpu.vector_store %arg7[%c0_34, %c0_35, %c0_36], %57 {strides = array<i32>} : memref<2x4x128xf32, #tpu.memory_space<vmem>>, vector<2x4x128xf32>,
    return
  }
  func.func @transform_0(%arg0: i32) -> (i32, i32, i32) {
    %c0_i32 = arith.constant 0 : i32
    %c0_i32_0 = arith.constant 0 : i32
    %c0_i32_1 = arith.constant 0 : i32
    return %arg0, %c0_i32, %c0_i32_0 : i32, i32, i32
  }
  func.func @transform_1(%arg0: i32) -> (i32, i32) {
    %c0_i32 = arith.constant 0 : i32
    %c0_i32_0 = arith.constant 0 : i32
    %c0_i32_1 = arith.constant 0 : i32
    return %c0_i32, %c0_i32_0 : i32, i32
  }
  func.func @transform_2(%arg0: i32) -> (i32, i32) {
    %c0_i32 = arith.constant 0 : i32
    %c0_i32_0 = arith.constant 0 : i32
    %c0_i32_1 = arith.constant 0 : i32
    return %c0_i32, %c0_i32_0 : i32, i32
  }
  func.func @transform_3(%arg0: i32) -> (i32, i32) {
    %c0_i32 = arith.constant 0 : i32
    %c0_i32_0 = arith.constant 0 : i32
    %c0_i32_1 = arith.constant 0 : i32
    return %c0_i32, %c0_i32_0 : i32, i32
  }
  func.func @transform_4(%arg0: i32) -> (i32, i32) {
    %c0_i32 = arith.constant 0 : i32
    %c0_i32_0 = arith.constant 0 : i32
    %c0_i32_1 = arith.constant 0 : i32
    return %c0_i32, %c0_i32_0 : i32, i32
  }
  func.func @transform_5(%arg0: i32) -> (i32, i32) {
    %c0_i32 = arith.constant 0 : i32
    %c0_i32_0 = arith.constant 0 : i32
    %c0_i32_1 = arith.constant 0 : i32
    return %c0_i32, %c0_i32_0 : i32, i32
  }
  func.func @transform_6(%arg0: i32) -> (i32, i32, i32) {
    %c0_i32 = arith.constant 0 : i32
    %c0_i32_0 = arith.constant 0 : i32
    %c0_i32_1 = arith.constant 0 : i32
    return %arg0, %c0_i32, %c0_i32_0 : i32, i32, i32
  }
}

</mosaic_0001>

<llo_original>
// kernel: tpu_custom_call.1
$region0: #{tpu_custom_call.1}
  #allocation0 [shape = 'u32[]', space=smem, size = 0x4, offset = 0x4, fixed_abs, tag = 'smem constant byte address 0x4 - core index']
  #allocation1 [shape = 'u32[144,128]{1,0:T(1,128)}', space=vmem, size = 0x12000, scoped, tag = 'internal scratch']
  %s0 = inlined_call_operand.vmem [shape: f32[2,4,128], index: 0, kind: input, shape index: {}]
  %s1 = inlined_call_operand.vmem [shape: f32[128,8], index: 1, kind: input, shape index: {}]
  %s2 = inlined_call_operand.vmem [shape: f32[1,8], index: 2, kind: input, shape index: {}]
  %s3 = inlined_call_operand.vmem [shape: f32[8,128], index: 3, kind: input, shape index: {}]
  %s4 = inlined_call_operand.vmem [shape: f32[8,128], index: 4, kind: input, shape index: {}]
  %s5 = inlined_call_operand.vmem [shape: f32[1,128], index: 5, kind: input, shape index: {}]
  %s6 = inlined_call_operand.hbm [shape: f32[2,4,128], index: 6, kind: output, shape index: {}]
  %s7 = sld [smem:[#allocation0]]
  $region34: #{tpu_custom_call.1} parent=0
    _
  %s9 = ssub.s32 1, %s7
  %s10 = scalar_select 0, %s9, %s7
  $region1: #{tpu_custom_call.1} parent=0
    #allocation2 [shape = 'u8[4096]{0}', space=vmem, size = 0x1000, scoped, tag = 'output window, operand 0, single buffered']
    #allocation3 [shape = 's32[1]{0}', space=sflag, size = 0x4, scoped, tag = 'scoped memory for tpu_custom_call.1']
    %11 = vsyncpa [#allocation3], 0
    // Predicated region
    $region2: #{tpu_custom_call.1} parent=1 // pred_check
      _
    $region3: #{tpu_custom_call.1} parent=1 // pred_check_branch
      %13 = sbr.rel (0) target = $region5
    $region4: #{tpu_custom_call.1} parent=1 // pred_region
      _
    $region5: #{tpu_custom_call.1} parent=1 // pred_fallthru
      _
    // Predicated region
    $region6: #{tpu_custom_call.1} parent=1 // pred_check
      _
    $region7: #{tpu_custom_call.1} parent=1 // pred_check_branch
      %15 = sbr.rel (0) target = $region9
    $region8: #{tpu_custom_call.1} parent=1 // pred_region
      _
    $region9: #{tpu_custom_call.1} parent=1 // pred_fallthru
      _
    // Predicated region
    $region10: #{tpu_custom_call.1} parent=1 // pred_check
      _
    $region11: #{tpu_custom_call.1} parent=1 // pred_check_branch
      %17 = sbr.rel (0) target = $region13
    $region12: #{tpu_custom_call.1} parent=1 // pred_region
      _
    $region13: #{tpu_custom_call.1} parent=1 // pred_fallthru
      _
    // Predicated region
    $region14: #{tpu_custom_call.1} parent=1 // pred_check
      _
    $region15: #{tpu_custom_call.1} parent=1 // pred_check_branch
      %19 = sbr.rel (0) target = $region17
    $region16: #{tpu_custom_call.1} parent=1 // pred_region
      _
    $region17: #{tpu_custom_call.1} parent=1 // pred_fallthru
      _
    // Predicated region
    $region18: #{tpu_custom_call.1} parent=1 // pred_check
      _
    $region19: #{tpu_custom_call.1} parent=1 // pred_check_branch
      %21 = sbr.rel (0) target = $region21
    $region20: #{tpu_custom_call.1} parent=1 // pred_region
      _
    $region21: #{tpu_custom_call.1} parent=1 // pred_fallthru
      _
    // Predicated region
    $region22: #{tpu_custom_call.1} parent=1 // pred_check
      _
    $region23: #{tpu_custom_call.1} parent=1 // pred_check_branch
      %23 = sbr.rel (0) target = $region25
    $region24: #{tpu_custom_call.1} parent=1 // pred_region
      _
    $region25: #{tpu_custom_call.1} parent=1 // pred_fallthru
      _
    %v24 = vld [vmem:[%s0] sm:$0xf]
    %v25 = vld [vmem:[%s0 + $0x4] sm:$0xf]
    %vm26 = vcmask 1043456
    %v27 = vsel %vm26, %v24, 0.0
    %v28 = vrot.slane %v27, 4
    %v29 = vadd.f32 %v27, %v28
    %v30 = vrot.slane %v29, 2
    %v31 = vadd.f32 %v29, %v30
    %v32 = vrot.slane %v31, 1
    %v33 = vadd.f32 %v31, %v32
    %v34 = vsel %vm26, %v25, 0.0
    %v35 = vrot.slane %v34, 4
    %v36 = vadd.f32 %v34, %v35
    %v37 = vrot.slane %v36, 2
    %v38 = vadd.f32 %v36, %v37
    %v39 = vrot.slane %v38, 1
    %v40 = vadd.f32 %v38, %v39
    %v41 = vsel %vm26, %v24, -inf
    %v42 = vrot.slane %v41, 4
    %v43 = vmax.f32 %v41, %v42
    %v44 = vrot.slane %v43, 2
    %v45 = vmax.f32 %v43, %v44
    %v46 = vrot.slane %v45, 1
    %v47 = vmax.f32 %v45, %v46
    %v48 = vsel %vm26, %v25, -inf
    %v49 = vrot.slane %v48, 4
    %v50 = vmax.f32 %v48, %v49
    %v51 = vrot.slane %v50, 2
    %v52 = vmax.f32 %v50, %v51
    %v53 = vrot.slane %v52, 1
    %v54 = vmax.f32 %v52, %v53
    %v55 = vld [vmem:[%s1] sm:$0xff]
    %v56 = vld [vmem:[%s1 + $0x8] sm:$0xff]
    %v57 = vld [vmem:[%s1 + $0x10] sm:$0xff]
    %v58 = vld [vmem:[%s1 + $0x18] sm:$0xff]
    %v59 = vld [vmem:[%s1 + $0x20] sm:$0xff]
    %v60 = vld [vmem:[%s1 + $0x28] sm:$0xff]
    %v61 = vld [vmem:[%s1 + $0x30] sm:$0xff]
    %v62 = vld [vmem:[%s1 + $0x38] sm:$0xff]
    %v63 = vld [vmem:[%s1 + $0x40] sm:$0xff]
    %v64 = vld [vmem:[%s1 + $0x48] sm:$0xff]
    %v65 = vld [vmem:[%s1 + $0x50] sm:$0xff]
    %v66 = vld [vmem:[%s1 + $0x58] sm:$0xff]
    %v67 = vld [vmem:[%s1 + $0x60] sm:$0xff]
    %v68 = vld [vmem:[%s1 + $0x68] sm:$0xff]
    %v69 = vld [vmem:[%s1 + $0x70] sm:$0xff]
    %v70 = vld [vmem:[%s1 + $0x78] sm:$0xff]
    %v71 = vld [vmem:[%s2] sm:$0x1]
    %v72 = vld [vmem:[%s3] sm:$0xff]
    %v73 = vld [vmem:[%s4] sm:$0xff]
    %v74 = vld [vmem:[%s5] sm:$0x1]
    %vm77 = vcmask 1041409
    %v78 = vsel %vm77, %v40, %v33
    %80 = vrot.lane.b32.xlu0 %v78, 32
    %v81 = vpop.permute.xlu0 %80
    %v83 = vrot.slane %v81, 1
    %v86 = vadd.f32 %v33, %v81
    %v87 = vadd.f32 %v40, %v83
    %v90 = vsel %vm77, %v54, %v47
    %92 = vrot.lane.b32.xlu0 %v90, 32
    %v93 = vpop.permute.xlu0 %92
    %v95 = vrot.slane %v93, 1
    %v98 = vmax.f32 %v47, %v93
    %v99 = vmax.f32 %v54, %v95
    %100 = vrot.lane.b32.xlu0 %v78, 64
    %v101 = vpop.permute.xlu0 %100
    %v103 = vrot.slane %v101, 1
    %v106 = vadd.f32 %v86, %v101
    %v107 = vadd.f32 %v87, %v103
    %108 = vrot.lane.b32.xlu0 %v90, 64
    %v109 = vpop.permute.xlu0 %108
    %v111 = vrot.slane %v109, 1
    %v114 = vmax.f32 %v98, %v109
    %v115 = vmax.f32 %v99, %v111
    %116 = vrot.lane.b32.xlu0 %v78, 96
    %v117 = vpop.permute.xlu0 %116
    %v119 = vrot.slane %v117, 1
    %v122 = vadd.f32 %v106, %v117
    %v123 = vadd.f32 %v107, %v119
    %124 = vrot.lane.b32.xlu0 %v90, 96
    %v125 = vpop.permute.xlu0 %124
    %v127 = vrot.slane %v125, 1
    %v130 = vmax.f32 %v114, %v125
    %v131 = vmax.f32 %v115, %v127
    %v132 = vmul.f32 %v122, 0.0625
    %v133 = vmul.f32 %v123, 0.0625
    %v135 = vlaneseq
    %v136 = vshrl.u32 %v135, 7
    %v137 = vsub.s32 0, %v136
    %v138 = vrot.slane %v71, %v137
    %v142 = vrot.slane %v133, 7
    %v143 = vsel %vm77, %v142, %v132
    %145 = vmatprep.subr.mxu0 0.0
    %146 = vmatpush1.msra.mxu0 %v55
    %147 = vmatprep.subr.mxu0 0.0
    %148 = vmatpush1.msra.mxu0 %v56
    %149 = vmatprep.subr.mxu0 0.0
    %150 = vmatpush1.msra.mxu0 %v57
    %151 = vmatprep.subr.mxu0 0.0
    %152 = vmatpush1.msra.mxu0 %v58
    %153 = vmatprep.subr.mxu0 0.0
    %154 = vmatpush1.msra.mxu0 %v59
    %155 = vmatprep.subr.mxu0 0.0
    %156 = vmatpush1.msra.mxu0 %v60
    %157 = vmatprep.subr.mxu0 0.0
    %158 = vmatpush1.msra.mxu0 %v61
    %159 = vmatprep.subr.mxu0 0.0
    %160 = vmatpush1.msra.mxu0 %v62
    %161 = vmatprep.subr.mxu0 0.0
    %162 = vmatpush1.msra.mxu0 %v63
    %163 = vmatprep.subr.mxu0 0.0
    %164 = vmatpush1.msra.mxu0 %v64
    %165 = vmatprep.subr.mxu0 0.0
    %166 = vmatpush1.msra.mxu0 %v65
    %167 = vmatprep.subr.mxu0 0.0
    %168 = vmatpush1.msra.mxu0 %v66
    %169 = vmatprep.subr.mxu0 0.0
    %170 = vmatpush1.msra.mxu0 %v67
    %171 = vmatprep.subr.mxu0 0.0
    %172 = vmatpush1.msra.mxu0 %v68
    %173 = vmatprep.subr.mxu0 0.0
    %174 = vmatpush1.msra.mxu0 %v69
    %175 = vmatprep.subr.mxu0 0.0
    %176 = vmatpush1.msra.mxu0 %v70
    %177 = vmatprep.subr.mxu0 0.0
    %178 = vmatpush1.msra.mxu0 0.0
    %179 = vmatprep.subr.mxu0 0.0
    %180 = vmatpush1.msra.mxu0 0.0
    %181 = vmatprep.subr.mxu0 0.0
    %182 = vmatpush1.msra.mxu0 0.0
    %183 = vmatprep.subr.mxu0 0.0
    %184 = vmatpush1.msra.mxu0 0.0
    %185 = vmatprep.subr.mxu0 0.0
    %186 = vmatpush1.msra.mxu0 0.0
    %187 = vmatprep.subr.mxu0 0.0
    %188 = vmatpush1.msra.mxu0 0.0
    %189 = vmatprep.subr.mxu0 0.0
    %190 = vmatpush1.msra.mxu0 0.0
    %191 = vmatprep.subr.mxu0 0.0
    %192 = vmatpush1.msra.mxu0 0.0
    %193 = vmatprep.subr.mxu0 0.0
    %194 = vmatpush1.msra.mxu0 0.0
    %195 = vmatprep.subr.mxu0 0.0
    %196 = vmatpush1.msra.mxu0 0.0
    %197 = vmatprep.subr.mxu0 0.0
    %198 = vmatpush1.msra.mxu0 0.0
    %199 = vmatprep.subr.mxu0 0.0
    %200 = vmatpush1.msra.mxu0 0.0
    %201 = vmatprep.subr.mxu0 0.0
    %202 = vmatpush1.msra.mxu0 0.0
    %203 = vmatprep.subr.mxu0 0.0
    %204 = vmatpush1.msra.mxu0 0.0
    %205 = vmatprep.subr.mxu0 0.0
    %206 = vmatpush1.msra.mxu0 0.0
    %207 = vmatprep.subr.mxu0 0.0
    %208 = vmatpush1.msra.mxu0 0.0
    %209 = vmatprep.mubr.f32.mxu0 0.0
    %210 = vmatmul.mubr.f32.gmra.mrb[0].mxu0 %v143
    %v211 = vpop.f32.mrb[0].mxu0
    %v212 = vadd.f32 %v138, %v211
    %v213 = vpop.f32.mrb[0].mxu0
    %214 = vdwg.mxu0
    %vm215 = vcmp.ge.f32.partialorder %v212, 0.0
    %v216 = vmul.f32 %v212, 0.2
    %v217 = vsel %vm215, %v212, %v216
    %v220 = vrot.slane %v131, 7
    %v221 = vsel %vm77, %v220, %v130
    %223 = vmatprep.subr.mxu0 0.0
    %224 = vmatpush1.msra.mxu0 %v55
    %225 = vmatprep.subr.mxu0 0.0
    %226 = vmatpush1.msra.mxu0 %v56
    %227 = vmatprep.subr.mxu0 0.0
    %228 = vmatpush1.msra.mxu0 %v57
    %229 = vmatprep.subr.mxu0 0.0
    %230 = vmatpush1.msra.mxu0 %v58
    %231 = vmatprep.subr.mxu0 0.0
    %232 = vmatpush1.msra.mxu0 %v59
    %233 = vmatprep.subr.mxu0 0.0
    %234 = vmatpush1.msra.mxu0 %v60
    %235 = vmatprep.subr.mxu0 0.0
    %236 = vmatpush1.msra.mxu0 %v61
    %237 = vmatprep.subr.mxu0 0.0
    %238 = vmatpush1.msra.mxu0 %v62
    %239 = vmatprep.subr.mxu0 0.0
    %240 = vmatpush1.msra.mxu0 %v63
    %241 = vmatprep.subr.mxu0 0.0
    %242 = vmatpush1.msra.mxu0 %v64
    %243 = vmatprep.subr.mxu0 0.0
    %244 = vmatpush1.msra.mxu0 %v65
    %245 = vmatprep.subr.mxu0 0.0
    %246 = vmatpush1.msra.mxu0 %v66
    %247 = vmatprep.subr.mxu0 0.0
    %248 = vmatpush1.msra.mxu0 %v67
    %249 = vmatprep.subr.mxu0 0.0
    %250 = vmatpush1.msra.mxu0 %v68
    %251 = vmatprep.subr.mxu0 0.0
    %252 = vmatpush1.msra.mxu0 %v69
    %253 = vmatprep.subr.mxu0 0.0
    %254 = vmatpush1.msra.mxu0 %v70
    %255 = vmatprep.subr.mxu0 0.0
    %256 = vmatpush1.msra.mxu0 0.0
    %257 = vmatprep.subr.mxu0 0.0
    %258 = vmatpush1.msra.mxu0 0.0
    %259 = vmatprep.subr.mxu0 0.0
    %260 = vmatpush1.msra.mxu0 0.0
    %261 = vmatprep.subr.mxu0 0.0
    %262 = vmatpush1.msra.mxu0 0.0
    %263 = vmatprep.subr.mxu0 0.0
    %264 = vmatpush1.msra.mxu0 0.0
    %265 = vmatprep.subr.mxu0 0.0
    %266 = vmatpush1.msra.mxu0 0.0
    %267 = vmatprep.subr.mxu0 0.0
    %268 = vmatpush1.msra.mxu0 0.0
    %269 = vmatprep.subr.mxu0 0.0
    %270 = vmatpush1.msra.mxu0 0.0
    %271 = vmatprep.subr.mxu0 0.0
    %272 = vmatpush1.msra.mxu0 0.0
    %273 = vmatprep.subr.mxu0 0.0
    %274 = vmatpush1.msra.mxu0 0.0
    %275 = vmatprep.subr.mxu0 0.0
    %276 = vmatpush1.msra.mxu0 0.0
    %277 = vmatprep.subr.mxu0 0.0
    %278 = vmatpush1.msra.mxu0 0.0
    %279 = vmatprep.subr.mxu0 0.0
    %280 = vmatpush1.msra.mxu0 0.0
    %281 = vmatprep.subr.mxu0 0.0
    %282 = vmatpush1.msra.mxu0 0.0
    %283 = vmatprep.subr.mxu0 0.0
    %284 = vmatpush1.msra.mxu0 0.0
    %285 = vmatprep.subr.mxu0 0.0
    %286 = vmatpush1.msra.mxu0 0.0
    %287 = vmatprep.mubr.f32.mxu0 0.0
    %288 = vmatmul.mubr.f32.gmra.mrb[0].mxu0 %v221
    %v289 = vpop.f32.mrb[0].mxu0
    %v290 = vadd.f32 %v138, %v289
    %v291 = vpop.f32.mrb[0].mxu0
    %292 = vdwg.mxu0
    %vm293 = vcmp.ge.f32.partialorder %v290, 0.0
    %v294 = vmul.f32 %v290, 0.2
    %v295 = vsel %vm293, %v290, %v294
    %vm296 = vcmask 64512
    %v298 = vsel %vm296, %v295, 0
    %300 = vmatprep.subr.mxu0 0.0
    %301 = vmatpush1.msra.mxu0 %v73
    %302 = vmatprep.subr.mxu0 0.0
    %303 = vmatpush1.msra.mxu0 0.0
    %304 = vmatprep.subr.mxu0 0.0
    %305 = vmatpush1.msra.mxu0 0.0
    %306 = vmatprep.subr.mxu0 0.0
    %307 = vmatpush1.msra.mxu0 0.0
    %308 = vmatprep.subr.mxu0 0.0
    %309 = vmatpush1.msra.mxu0 0.0
    %310 = vmatprep.subr.mxu0 0.0
    %311 = vmatpush1.msra.mxu0 0.0
    %312 = vmatprep.subr.mxu0 0.0
    %313 = vmatpush1.msra.mxu0 0.0
    %314 = vmatprep.subr.mxu0 0.0
    %315 = vmatpush1.msra.mxu0 0.0
    %316 = vmatprep.subr.mxu0 0.0
    %317 = vmatpush1.msra.mxu0 0.0
    %318 = vmatprep.subr.mxu0 0.0
    %319 = vmatpush1.msra.mxu0 0.0
    %320 = vmatprep.subr.mxu0 0.0
    %321 = vmatpush1.msra.mxu0 0.0
    %322 = vmatprep.subr.mxu0 0.0
    %323 = vmatpush1.msra.mxu0 0.0
    %324 = vmatprep.subr.mxu0 0.0
    %325 = vmatpush1.msra.mxu0 0.0
    %326 = vmatprep.subr.mxu0 0.0
    %327 = vmatpush1.msra.mxu0 0.0
    %328 = vmatprep.subr.mxu0 0.0
    %329 = vmatpush1.msra.mxu0 0.0
    %330 = vmatprep.subr.mxu0 0.0
    %331 = vmatpush1.msra.mxu0 0.0
    %332 = vmatprep.subr.mxu0 0.0
    %333 = vmatpush1.msra.mxu0 0.0
    %334 = vmatprep.subr.mxu0 0.0
    %335 = vmatpush1.msra.mxu0 0.0
    %336 = vmatprep.subr.mxu0 0.0
    %337 = vmatpush1.msra.mxu0 0.0
    %338 = vmatprep.subr.mxu0 0.0
    %339 = vmatpush1.msra.mxu0 0.0
    %340 = vmatprep.subr.mxu0 0.0
    %341 = vmatpush1.msra.mxu0 0.0
    %342 = vmatprep.subr.mxu0 0.0
    %343 = vmatpush1.msra.mxu0 0.0
    %344 = vmatprep.subr.mxu0 0.0
    %345 = vmatpush1.msra.mxu0 0.0
    %346 = vmatprep.subr.mxu0 0.0
    %347 = vmatpush1.msra.mxu0 0.0
    %348 = vmatprep.subr.mxu0 0.0
    %349 = vmatpush1.msra.mxu0 0.0
    %350 = vmatprep.subr.mxu0 0.0
    %351 = vmatpush1.msra.mxu0 0.0
    %352 = vmatprep.subr.mxu0 0.0
    %353 = vmatpush1.msra.mxu0 0.0
    %354 = vmatprep.subr.mxu0 0.0
    %355 = vmatpush1.msra.mxu0 0.0
    %356 = vmatprep.subr.mxu0 0.0
    %357 = vmatpush1.msra.mxu0 0.0
    %358 = vmatprep.subr.mxu0 0.0
    %359 = vmatpush1.msra.mxu0 0.0
    %360 = vmatprep.subr.mxu0 0.0
    %361 = vmatpush1.msra.mxu0 0.0
    %362 = vmatprep.subr.mxu0 0.0
    %363 = vmatpush1.msra.mxu0 0.0
    %364 = vmatprep.mubr.f32.mxu0 0.0
    %365 = vmatmul.mubr.f32.gmra.mrb[0].mxu0 %v298
    %v366 = vpop.f32.mrb[0].mxu0
    %v367 = vadd.f32 0.0, %v366
    %v368 = vpop.f32.mrb[0].mxu0
    %369 = vdwg.mxu0
    %v371 = vsel %vm296, %v217, 0
    %373 = vmatprep.subr.mxu0 0.0
    %374 = vmatpush1.msra.mxu0 %v72
    %375 = vmatprep.subr.mxu0 0.0
    %376 = vmatpush1.msra.mxu0 0.0
    %377 = vmatprep.subr.mxu0 0.0
    %378 = vmatpush1.msra.mxu0 0.0
    %379 = vmatprep.subr.mxu0 0.0
    %380 = vmatpush1.msra.mxu0 0.0
    %381 = vmatprep.subr.mxu0 0.0
    %382 = vmatpush1.msra.mxu0 0.0
    %383 = vmatprep.subr.mxu0 0.0
    %384 = vmatpush1.msra.mxu0 0.0
    %385 = vmatprep.subr.mxu0 0.0
    %386 = vmatpush1.msra.mxu0 0.0
    %387 = vmatprep.subr.mxu0 0.0
    %388 = vmatpush1.msra.mxu0 0.0
    %389 = vmatprep.subr.mxu0 0.0
    %390 = vmatpush1.msra.mxu0 0.0
    %391 = vmatprep.subr.mxu0 0.0
    %392 = vmatpush1.msra.mxu0 0.0
    %393 = vmatprep.subr.mxu0 0.0
    %394 = vmatpush1.msra.mxu0 0.0
    %395 = vmatprep.subr.mxu0 0.0
    %396 = vmatpush1.msra.mxu0 0.0
    %397 = vmatprep.subr.mxu0 0.0
    %398 = vmatpush1.msra.mxu0 0.0
    %399 = vmatprep.subr.mxu0 0.0
    %400 = vmatpush1.msra.mxu0 0.0
    %401 = vmatprep.subr.mxu0 0.0
    %402 = vmatpush1.msra.mxu0 0.0
    %403 = vmatprep.subr.mxu0 0.0
    %404 = vmatpush1.msra.mxu0 0.0
    %405 = vmatprep.subr.mxu0 0.0
    %406 = vmatpush1.msra.mxu0 0.0
    %407 = vmatprep.subr.mxu0 0.0
    %408 = vmatpush1.msra.mxu0 0.0
    %409 = vmatprep.subr.mxu0 0.0
    %410 = vmatpush1.msra.mxu0 0.0
    %411 = vmatprep.subr.mxu0 0.0
    %412 = vmatpush1.msra.mxu0 0.0
    %413 = vmatprep.subr.mxu0 0.0
    %414 = vmatpush1.msra.mxu0 0.0
    %415 = vmatprep.subr.mxu0 0.0
    %416 = vmatpush1.msra.mxu0 0.0
    %417 = vmatprep.subr.mxu0 0.0
    %418 = vmatpush1.msra.mxu0 0.0
    %419 = vmatprep.subr.mxu0 0.0
    %420 = vmatpush1.msra.mxu0 0.0
    %421 = vmatprep.subr.mxu0 0.0
    %422 = vmatpush1.msra.mxu0 0.0
    %423 = vmatprep.subr.mxu0 0.0
    %424 = vmatpush1.msra.mxu0 0.0
    %425 = vmatprep.subr.mxu0 0.0
    %426 = vmatpush1.msra.mxu0 0.0
    %427 = vmatprep.subr.mxu0 0.0
    %428 = vmatpush1.msra.mxu0 0.0
    %429 = vmatprep.subr.mxu0 0.0
    %430 = vmatpush1.msra.mxu0 0.0
    %431 = vmatprep.subr.mxu0 0.0
    %432 = vmatpush1.msra.mxu0 0.0
    %433 = vmatprep.subr.mxu0 0.0
    %434 = vmatpush1.msra.mxu0 0.0
    %435 = vmatprep.subr.mxu0 0.0
    %436 = vmatpush1.msra.mxu0 0.0
    %437 = vmatprep.mubr.f32.mxu0 0.0
    %438 = vmatmul.mubr.f32.gmra.mrb[0].mxu0 %v371
    %v439 = vpop.f32.mrb[0].mxu0
    %v440 = vadd.f32 %v367, %v439
    %v441 = vpop.f32.mrb[0].mxu0
    %442 = vdwg.mxu0
    %v444 = vlaneseq
    %v445 = vshrl.u32 %v444, 7
    %v446 = vsub.s32 0, %v445
    %v447 = vrot.slane %v74, %v446
    %v449 = vadd.f32 %v440, %v447
    %vm450 = vcmp.ge.f32.partialorder %v449, 0.0
    %v451 = vmul.f32 %v449, 0.2
    %v452 = vsel %vm450, %v449, %v451
    %v453 = vxor.u32 %v452, 2147483648
    %v454 = vmul.f32 %v453, 1.442695
    %v455 = vpow.pop %v454
    %v456 = vadd.f32 %v455, 1.0
    %v457 = vrcp.pop %v456
    %v458 = vmul.f32 1.0, %v457
    %v461 = vunpack.c.l.s4 1966171168
    %v462 = vunpack.c.0.s8 %v461
    %v463 = vlaneseq
    %v464 = vshrl.u32 %v463, 7
    %v465 = vsub.s32 %v462, %v464
    %v466 = vrot.slane %v458, %v465
    %v467 = vcombine.high %v466, %v466
    %v469 = vunpack.c.l.s4 1966171168
    %v470 = vunpack.c.0.s8 %v469
    %v471 = vlaneseq
    %v472 = vshrl.u32 %v471, 7
    %v473 = vsub.s32 %v470, %v472
    %v474 = vrot.slane %v466, %v473
    %v476 = vunpack.c.l.s4 1966171168
    %v477 = vunpack.c.0.s8 %v476
    %v478 = vlaneseq
    %v479 = vshrl.u32 %v478, 7
    %v480 = vsub.s32 %v477, %v479
    %v481 = vrot.slane %v467, %v480
    %v482 = vlaneseq
    %v483 = vshrl.u32 %v482, 7
    %v484 = vsub.s32 0, %v483
    %v485 = vrot.slane %v474, %v484
    %v486 = vlaneseq
    %v487 = vshrl.u32 %v486, 7
    %v488 = vsub.s32 0, %v487
    %v489 = vrot.slane %v481, %v488
    %v492 = vmul.f32 %v24, %v485
    %v493 = vmul.f32 %v25, %v489
    %494 = vst [vmem:[#allocation2] sm:$0xf] %v492
    %495 = vst [vmem:[#allocation2 + $0x4] sm:$0xf] %v493
    // Predicated region
    $region26: #{tpu_custom_call.1} parent=1 // pred_check
      _
    $region27: #{tpu_custom_call.1} parent=1 // pred_check_branch
      %497 = sbr.rel (0) target = $region29
    $region28: #{tpu_custom_call.1} parent=1 // pred_region
      %s499 = ssub.s32 128, 128
      %500 = vsyncadd [#allocation3], %s499
      %s501 = sshll.u32 [#allocation2], 4
      %s502 = int_to_ptr.vmem [resolvable:$true] %s501
      %507 = dma.vmem_to_hbm [thread:$0]  %s502, 128, %s6, [#allocation3], 64, 64, 4
    $region29: #{tpu_custom_call.1} parent=1 // pred_fallthru
      _
    // Predicated region
    $region30: #{tpu_custom_call.1} parent=1 // pred_check
      _
    $region31: #{tpu_custom_call.1} parent=1 // pred_check_branch
      %509 = sbr.rel (0) target = $region33
    $region32: #{tpu_custom_call.1} parent=1 // pred_region
      %510 = dma.done [#allocation3], 128
    $region33: #{tpu_custom_call.1} parent=1 // pred_fallthru
      _
    %511 = vsyncpa [#allocation3], 1

</llo_original>
